<compile_context>
chip_gen: v5e
topology: v5e:2x2
jax: 0.10.0
libtpu: 0.0.40
codegen_flags: <defaults>
</compile_context>

<pallas_src>
import jax
import jax.numpy as jnp
from jax.experimental import pallas as pl
from jax.experimental.pallas import tpu as pltpu

IN_FEATURES = 10 * 10   # 100
IN_PAD = 128            # lane-dense K for the first matmul
H1 = 256
H2 = 128
OUT_FEATURES = 10
OUT_PAD = 128           # lane-dense output width (sliced back to 10)


def mlp_kernel(x_ref, w1_ref, b1_ref, w2_ref, b2_ref, w3_ref, b3_ref, o_ref):
    """Fused 3-layer MLP on one batch tile: (matmul + bias + ReLU) x2, matmul + bias."""
    x = x_ref[...]                                                # (TB, 128) bf16
    h1 = jnp.dot(x, w1_ref[...], preferred_element_type=jnp.float32)
    h1 = jnp.maximum(h1 + b1_ref[...], 0.0)                       # (TB, 256) f32 epilogue
    h2 = jnp.dot(h1.astype(w2_ref.dtype), w2_ref[...],
                 preferred_element_type=jnp.float32)
    h2 = jnp.maximum(h2 + b2_ref[...], 0.0)                       # (TB, 128) f32
    logits = jnp.dot(h2.astype(w3_ref.dtype), w3_ref[...],
                     preferred_element_type=jnp.float32)
    o_ref[...] = (logits + b3_ref[...]).astype(o_ref.dtype)       # (TB, 128)


def _round_up(n, m):
    return ((n + m - 1) // m) * m


@jax.jit
def mlp_forward(x, w1, b1, w2, b2, w3, b3):
    """x: (B, C, H, W) with C*H*W == 100. Weights stored as (in, out); biases (1, out)."""
    B = x.shape[0]
    x2d = x.reshape(B, -1)
    assert x2d.shape[1] == IN_FEATURES

    # ---- batch tiling: multiples of 8 rows, 256-row tiles at large B ----
    tile_b = 256 if B >= 256 else _round_up(B, 8)
    b_pad = _round_up(B, tile_b)
    n_tiles = b_pad // tile_b

    # ---- zero-pad to lane-dense shapes; bf16 operands, f32 biases ----
    xp = jnp.zeros((b_pad, IN_PAD), jnp.bfloat16
                   ).at[:B, :IN_FEATURES].set(x2d.astype(jnp.bfloat16))
    w1p = jnp.zeros((IN_PAD, H1), jnp.bfloat16
                    ).at[:IN_FEATURES, :].set(w1.astype(jnp.bfloat16))
    w2p = w2.astype(jnp.bfloat16)
    w3p = jnp.zeros((H2, OUT_PAD), jnp.bfloat16
                    ).at[:, :OUT_FEATURES].set(w3.astype(jnp.bfloat16))
    b1p = b1.astype(jnp.float32).reshape(1, H1)
    b2p = b2.astype(jnp.float32).reshape(1, H2)
    b3p = jnp.zeros((1, OUT_PAD), jnp.float32
                    ).at[:, :OUT_FEATURES].set(b3.astype(jnp.float32).reshape(1, OUT_FEATURES))

    def const_spec(shape):
        # Weight-stationary: same block for every grid step (stays VMEM-resident).
        return pl.BlockSpec(shape, lambda i: tuple(0 for _ in shape))

    flops = 2 * b_pad * (IN_PAD * H1 + H1 * H2 + H2 * OUT_PAD)
    bytes_accessed = (xp.size * 2 + w1p.size * 2 + w2p.size * 2 + w3p.size * 2
                      + b1p.size * 4 + b2p.size * 4 + b3p.size * 4
                      + b_pad * OUT_PAD * 4)

    out = pl.pallas_call(
        mlp_kernel,
        out_shape=jax.ShapeDtypeStruct((b_pad, OUT_PAD), jnp.float32),
        grid=(n_tiles,),
        in_specs=[
            pl.BlockSpec((tile_b, IN_PAD), lambda i: (i, 0)),   # streamed x tile
            const_spec((IN_PAD, H1)),
            const_spec((1, H1)),
            const_spec((H1, H2)),
            const_spec((1, H2)),
            const_spec((H2, OUT_PAD)),
            const_spec((1, OUT_PAD)),
        ],
        out_specs=pl.BlockSpec((tile_b, OUT_PAD), lambda i: (i, 0)),
        compiler_params=pltpu.CompilerParams(
            dimension_semantics=("parallel",),          # shards batch tiles across v7x's 2 TCs
            vmem_limit_bytes=32 * 1024 * 1024,          # sized for v7x's smaller VMEM too
        ),
        cost_estimate=pl.CostEstimate(
            flops=flops, transcendentals=0, bytes_accessed=bytes_accessed),
    )(xp, w1p, b1p, w2p, b2p, w3p, b3p)

    # Slice away batch padding and the lane padding of the 10-wide output.
    return out[:B, :OUT_FEATURES]


def init_linear_params(key, in_features, out_features):
    """Deterministic init mimicking torch.nn.Linear default (uniform +/- 1/sqrt(in))."""
    kw, kb = jax.random.split(key)
    bound = 1.0 / jnp.sqrt(jnp.float32(in_features))
    # Stored as (in, out) so the kernel computes x @ W (== x @ W_torch.T).
    w = jax.random.uniform(kw, (in_features, out_features), jnp.float32,
                           minval=-bound, maxval=bound)
    b = jax.random.uniform(kb, (1, out_features), jnp.float32,
                           minval=-bound, maxval=bound)
    return w, b


if __name__ == "__main__":
    key = jax.random.PRNGKey(0)
    kx, k1, k2, k3 = jax.random.split(key, 4)

    # Small deterministic input consistent with the 10x10 flattened features.
    x = jax.random.normal(kx, (2, 1, 10, 10), jnp.float32)

    w1, b1 = init_linear_params(k1, IN_FEATURES, H1)
    w2, b2 = init_linear_params(k2, H1, H2)
    w3, b3 = init_linear_params(k3, H2, OUT_FEATURES)

    out = jax.block_until_ready(mlp_forward(x, w1, b1, w2, b2, w3, b3))
    assert out.shape == (2, OUT_FEATURES)

    # Reference with the same bf16-operand / f32-accumulate numerics as the kernel.
    xf = x.reshape(x.shape[0], -1).astype(jnp.bfloat16)
    w1b, w2b, w3b = (w.astype(jnp.bfloat16) for w in (w1, w2, w3))
    h1 = jnp.maximum(jnp.dot(xf, w1b, preferred_element_type=jnp.float32) + b1, 0.0)
    h2 = jnp.maximum(jnp.dot(h1.astype(jnp.bfloat16), w2b,
                             preferred_element_type=jnp.float32) + b2, 0.0)
    ref = jnp.dot(h2.astype(jnp.bfloat16), w3b,
                  preferred_element_type=jnp.float32) + b3
    assert jnp.allclose(out, ref, atol=2e-3, rtol=2e-3)

    print("KERNEL_OK")
</pallas_src>

<mosaic_0001>
module attributes {stable_mosaic.version = 11 : i64} {
  func.func @mlp_kernel(%arg0: i32, %arg1: memref<8x128xbf16, #tpu.memory_space<vmem>>, %arg2: memref<128x256xbf16, #tpu.memory_space<vmem>>, %arg3: memref<1x256xf32, #tpu.memory_space<vmem>>, %arg4: memref<256x128xbf16, #tpu.memory_space<vmem>>, %arg5: memref<1x128xf32, #tpu.memory_space<vmem>>, %arg6: memref<128x128xbf16, #tpu.memory_space<vmem>>, %arg7: memref<1x128xf32, #tpu.memory_space<vmem>>, %arg8: memref<8x128xf32, #tpu.memory_space<vmem>>) attributes {dimension_semantics = [#tpu.dimension_semantics<parallel>], iteration_bounds = array<i64: 1>, scalar_prefetch = 0 : i64, scratch_operands = 0 : i64, tpu.core_type = #tpu.core_type<tc>, window_params = [{transform_indices = @transform_0, window_bounds = array<i64: 8, 128>}, {pipeline_mode = #tpu.pipeline_mode<synchronous>, transform_indices = @transform_1, window_bounds = array<i64: 128, 256>}, {pipeline_mode = #tpu.pipeline_mode<synchronous>, transform_indices = @transform_2, window_bounds = array<i64: 1, 256>}, {pipeline_mode = #tpu.pipeline_mode<synchronous>, transform_indices = @transform_3, window_bounds = array<i64: 256, 128>}, {pipeline_mode = #tpu.pipeline_mode<synchronous>, transform_indices = @transform_4, window_bounds = array<i64: 1, 128>}, {pipeline_mode = #tpu.pipeline_mode<synchronous>, transform_indices = @transform_5, window_bounds = array<i64: 128, 128>}, {pipeline_mode = #tpu.pipeline_mode<synchronous>, transform_indices = @transform_6, window_bounds = array<i64: 1, 128>}, {transform_indices = @transform_7, window_bounds = array<i64: 8, 128>}]} {
    %c0 = arith.constant 0 : index
    %c0_0 = arith.constant 0 : index
    %0 = vector.load %arg1[%c0, %c0_0] : memref<8x128xbf16, #tpu.memory_space<vmem>>, vector<8x128xbf16>
    %c0_1 = arith.constant 0 : index
    %c0_2 = arith.constant 0 : index
    %1 = vector.load %arg2[%c0_1, %c0_2] : memref<128x256xbf16, #tpu.memory_space<vmem>>, vector<128x256xbf16>
    %cst = arith.constant dense<0.000000e+00> : vector<8x256xf32>
    %2 = tpu.matmul %0, %1, %cst {dimension_numbers = #tpu.dot_dimension_numbers<[1], [0], [0], [1], [0, 0, 1, 1], [], []>} : vector<8x128xbf16>, vector<128x256xbf16>, vector<8x256xf32> -> vector<8x256xf32>
    %c0_3 = arith.constant 0 : index
    %c0_4 = arith.constant 0 : index
    %3 = vector.load %arg3[%c0_3, %c0_4] : memref<1x256xf32, #tpu.memory_space<vmem>>, vector<1x256xf32>
    %4 = vector.broadcast %3 : vector<1x256xf32> to vector<8x256xf32>
    %5 = arith.addf %2, %4 : vector<8x256xf32>
    %cst_5 = arith.constant 0.000000e+00 : f32
    %6 = vector.broadcast %cst_5 : f32 to vector<8x256xf32>
    %7 = arith.maximumf %5, %6 : vector<8x256xf32>
    %8 = arith.truncf %7 : vector<8x256xf32> to vector<8x256xbf16>
    %c0_6 = arith.constant 0 : index
    %c0_7 = arith.constant 0 : index
    %9 = vector.load %arg4[%c0_6, %c0_7] : memref<256x128xbf16, #tpu.memory_space<vmem>>, vector<256x128xbf16>
    %cst_8 = arith.constant dense<0.000000e+00> : vector<8x128xf32>
    %10 = tpu.matmul %8, %9, %cst_8 {dimension_numbers = #tpu.dot_dimension_numbers<[1], [0], [0], [1], [0, 0, 1, 1], [], []>} : vector<8x256xbf16>, vector<256x128xbf16>, vector<8x128xf32> -> vector<8x128xf32>
    %c0_9 = arith.constant 0 : index
    %c0_10 = arith.constant 0 : index
    %11 = vector.load %arg5[%c0_9, %c0_10] : memref<1x128xf32, #tpu.memory_space<vmem>>, vector<1x128xf32>
    %12 = vector.broadcast %11 : vector<1x128xf32> to vector<8x128xf32>
    %13 = arith.addf %10, %12 : vector<8x128xf32>
    %cst_11 = arith.constant 0.000000e+00 : f32
    %14 = vector.broadcast %cst_11 : f32 to vector<8x128xf32>
    %15 = arith.maximumf %13, %14 : vector<8x128xf32>
    %16 = arith.truncf %15 : vector<8x128xf32> to vector<8x128xbf16>
    %c0_12 = arith.constant 0 : index
    %c0_13 = arith.constant 0 : index
    %17 = vector.load %arg6[%c0_12, %c0_13] : memref<128x128xbf16, #tpu.memory_space<vmem>>, vector<128x128xbf16>
    %cst_14 = arith.constant dense<0.000000e+00> : vector<8x128xf32>
    %18 = tpu.matmul %16, %17, %cst_14 {dimension_numbers = #tpu.dot_dimension_numbers<[1], [0], [0], [1], [0, 0, 1, 1], [], []>} : vector<8x128xbf16>, vector<128x128xbf16>, vector<8x128xf32> -> vector<8x128xf32>
    %c0_15 = arith.constant 0 : index
    %c0_16 = arith.constant 0 : index
    %19 = vector.load %arg7[%c0_15, %c0_16] : memref<1x128xf32, #tpu.memory_space<vmem>>, vector<1x128xf32>
    %20 = vector.broadcast %19 : vector<1x128xf32> to vector<8x128xf32>
    %21 = arith.addf %18, %20 : vector<8x128xf32>
    %c0_17 = arith.constant 0 : index
    %c0_18 = arith.constant 0 : index
    %22 = vector.load %arg8[%c0_17, %c0_18] : memref<8x128xf32, #tpu.memory_space<vmem>>, vector<8x128xf32>
    tpu.vector_store %arg8[%c0_17, %c0_18], %21 {strides = array<i32>} : memref<8x128xf32, #tpu.memory_space<vmem>>, vector<8x128xf32>,
    return
  }
  func.func @transform_0(%arg0: i32) -> (i32, i32) {
    %c0_i32 = arith.constant 0 : i32
    %c0_i32_0 = arith.constant 0 : i32
    return %arg0, %c0_i32 : i32, i32
  }
  func.func @transform_1(%arg0: i32) -> (i32, i32) {
    %c0_i32 = arith.constant 0 : i32
    %c0_i32_0 = arith.constant 0 : i32
    %c0_i32_1 = arith.constant 0 : i32
    return %c0_i32, %c0_i32_0 : i32, i32
  }
  func.func @transform_2(%arg0: i32) -> (i32, i32) {
    %c0_i32 = arith.constant 0 : i32
    %c0_i32_0 = arith.constant 0 : i32
    %c0_i32_1 = arith.constant 0 : i32
    return %c0_i32, %c0_i32_0 : i32, i32
  }
  func.func @transform_3(%arg0: i32) -> (i32, i32) {
    %c0_i32 = arith.constant 0 : i32
    %c0_i32_0 = arith.constant 0 : i32
    %c0_i32_1 = arith.constant 0 : i32
    return %c0_i32, %c0_i32_0 : i32, i32
  }
  func.func @transform_4(%arg0: i32) -> (i32, i32) {
    %c0_i32 = arith.constant 0 : i32
    %c0_i32_0 = arith.constant 0 : i32
    %c0_i32_1 = arith.constant 0 : i32
    return %c0_i32, %c0_i32_0 : i32, i32
  }
  func.func @transform_5(%arg0: i32) -> (i32, i32) {
    %c0_i32 = arith.constant 0 : i32
    %c0_i32_0 = arith.constant 0 : i32
    %c0_i32_1 = arith.constant 0 : i32
    return %c0_i32, %c0_i32_0 : i32, i32
  }
  func.func @transform_6(%arg0: i32) -> (i32, i32) {
    %c0_i32 = arith.constant 0 : i32
    %c0_i32_0 = arith.constant 0 : i32
    %c0_i32_1 = arith.constant 0 : i32
    return %c0_i32, %c0_i32_0 : i32, i32
  }
  func.func @transform_7(%arg0: i32) -> (i32, i32) {
    %c0_i32 = arith.constant 0 : i32
    %c0_i32_0 = arith.constant 0 : i32
    return %arg0, %c0_i32 : i32, i32
  }
}

</mosaic_0001>

<llo_original>
// kernel: mlp_forward.1
$region0: #{mlp_forward.1}
  #allocation0 [shape = 'u32[]', space=smem, size = 0x4, offset = 0x4, fixed_abs, tag = 'smem constant byte address 0x4 - core index']
  #allocation1 [shape = 'u32[72,128]{1,0:T(1,128)}', space=vmem, size = 0x9000, scoped, tag = 'internal scratch']
  %s0 = inlined_call_operand.vmem [shape: bf16[8,128], index: 0, kind: input, shape index: {}]
  %s1 = inlined_call_operand.vmem [shape: bf16[128,256], index: 1, kind: input, shape index: {}]
  %s2 = inlined_call_operand.vmem [shape: f32[1,256], index: 2, kind: input, shape index: {}]
  %s3 = inlined_call_operand.vmem [shape: bf16[256,128], index: 3, kind: input, shape index: {}]
  %s4 = inlined_call_operand.vmem [shape: f32[1,128], index: 4, kind: input, shape index: {}]
  %s5 = inlined_call_operand.vmem [shape: bf16[128,128], index: 5, kind: input, shape index: {}]
  %s6 = inlined_call_operand.vmem [shape: f32[1,128], index: 6, kind: input, shape index: {}]
  %s7 = inlined_call_operand.vmem [shape: f32[8,128], index: 7, kind: output, shape index: {}]
  %s8 = sld [smem:[#allocation0]]
  $region38: #{mlp_forward.1} parent=0
    _
  %s10 = ssub.s32 1, %s8
  %s11 = scalar_select 0, %s10, %s8
  // Predicated region
  $region2: #{mlp_forward.1} parent=0 // pred_check
    _
  $region3: #{mlp_forward.1} parent=0 // pred_check_branch
    %13 = sbr.rel (0) target = $region5
  $region4: #{mlp_forward.1} parent=0 // pred_region
    _
  $region5: #{mlp_forward.1} parent=0 // pred_fallthru
    _
  // Predicated region
  $region6: #{mlp_forward.1} parent=0 // pred_check
    _
  $region7: #{mlp_forward.1} parent=0 // pred_check_branch
    %15 = sbr.rel (0) target = $region9
  $region8: #{mlp_forward.1} parent=0 // pred_region
    _
  $region9: #{mlp_forward.1} parent=0 // pred_fallthru
    _
  // Predicated region
  $region10: #{mlp_forward.1} parent=0 // pred_check
    _
  $region11: #{mlp_forward.1} parent=0 // pred_check_branch
    %17 = sbr.rel (0) target = $region13
  $region12: #{mlp_forward.1} parent=0 // pred_region
    _
  $region13: #{mlp_forward.1} parent=0 // pred_fallthru
    _
  // Predicated region
  $region14: #{mlp_forward.1} parent=0 // pred_check
    _
  $region15: #{mlp_forward.1} parent=0 // pred_check_branch
    %19 = sbr.rel (0) target = $region17
  $region16: #{mlp_forward.1} parent=0 // pred_region
    _
  $region17: #{mlp_forward.1} parent=0 // pred_fallthru
    _
  // Predicated region
  $region18: #{mlp_forward.1} parent=0 // pred_check
    _
  $region19: #{mlp_forward.1} parent=0 // pred_check_branch
    %21 = sbr.rel (0) target = $region21
  $region20: #{mlp_forward.1} parent=0 // pred_region
    _
  $region21: #{mlp_forward.1} parent=0 // pred_fallthru
    _
  // Predicated region
  $region22: #{mlp_forward.1} parent=0 // pred_check
    _
  $region23: #{mlp_forward.1} parent=0 // pred_check_branch
    %23 = sbr.rel (0) target = $region25
  $region24: #{mlp_forward.1} parent=0 // pred_region
    _
  $region25: #{mlp_forward.1} parent=0 // pred_fallthru
    _
  // Predicated region
  $region26: #{mlp_forward.1} parent=0 // pred_check
    _
  $region27: #{mlp_forward.1} parent=0 // pred_check_branch
    %25 = sbr.rel (0) target = $region29
  $region28: #{mlp_forward.1} parent=0 // pred_region
    _
  $region29: #{mlp_forward.1} parent=0 // pred_fallthru
    _
  %v26 = vld [vmem:[%s0] sm:$0xf]
  %v27 = vld [vmem:[%s1] sm:$0xff]
  %v28 = vld [vmem:[%s1 + $0x8] sm:$0xff]
  %v29 = vld [vmem:[%s1 + $0x10] sm:$0xff]
  %v30 = vld [vmem:[%s1 + $0x18] sm:$0xff]
  %v31 = vld [vmem:[%s1 + $0x20] sm:$0xff]
  %v32 = vld [vmem:[%s1 + $0x28] sm:$0xff]
  %v33 = vld [vmem:[%s1 + $0x30] sm:$0xff]
  %v34 = vld [vmem:[%s1 + $0x38] sm:$0xff]
  %v35 = vld [vmem:[%s1 + $0x40] sm:$0xff]
  %v36 = vld [vmem:[%s1 + $0x48] sm:$0xff]
  %v37 = vld [vmem:[%s1 + $0x50] sm:$0xff]
  %v38 = vld [vmem:[%s1 + $0x58] sm:$0xff]
  %v39 = vld [vmem:[%s1 + $0x60] sm:$0xff]
  %v40 = vld [vmem:[%s1 + $0x68] sm:$0xff]
  %v41 = vld [vmem:[%s1 + $0x70] sm:$0xff]
  %v42 = vld [vmem:[%s1 + $0x78] sm:$0xff]
  %v43 = vld [vmem:[%s2] sm:$0x3]
  %v45 = vperm.slane %v43, 0
  %v46 = vperm.slane %v43, 1
  %v65 = vunpack.c.l.b16 %v27
  %v66 = vunpack.c.h.b16 %v27
  %v67 = vunpack.c.l.b16 %v28
  %v68 = vunpack.c.h.b16 %v28
  %v69 = vunpack.c.l.b16 %v29
  %v70 = vunpack.c.h.b16 %v29
  %v71 = vunpack.c.l.b16 %v30
  %v72 = vunpack.c.h.b16 %v30
  %v73 = vunpack.c.l.b16 %v31
  %v74 = vunpack.c.h.b16 %v31
  %v75 = vunpack.c.l.b16 %v32
  %v76 = vunpack.c.h.b16 %v32
  %v77 = vunpack.c.l.b16 %v33
  %v78 = vunpack.c.h.b16 %v33
  %v79 = vunpack.c.l.b16 %v34
  %v80 = vunpack.c.h.b16 %v34
  %v81 = vunpack.c.l.b16 %v35
  %v82 = vunpack.c.h.b16 %v35
  %v83 = vunpack.c.l.b16 %v36
  %v84 = vunpack.c.h.b16 %v36
  %v85 = vunpack.c.l.b16 %v37
  %v86 = vunpack.c.h.b16 %v37
  %v87 = vunpack.c.l.b16 %v38
  %v88 = vunpack.c.h.b16 %v38
  %v89 = vunpack.c.l.b16 %v39
  %v90 = vunpack.c.h.b16 %v39
  %v91 = vunpack.c.l.b16 %v40
  %v92 = vunpack.c.h.b16 %v40
  %v93 = vunpack.c.l.b16 %v41
  %v94 = vunpack.c.h.b16 %v41
  %v95 = vunpack.c.l.b16 %v42
  %v96 = vunpack.c.h.b16 %v42
  %v97 = vpack.c.b16 %v67, %v65
  %v98 = vpack.c.b16 %v68, %v66
  %v99 = vpack.c.b16 %v71, %v69
  %v100 = vpack.c.b16 %v72, %v70
  %v101 = vpack.c.b16 %v75, %v73
  %v102 = vpack.c.b16 %v76, %v74
  %v103 = vpack.c.b16 %v79, %v77
  %v104 = vpack.c.b16 %v80, %v78
  %v105 = vpack.c.b16 %v83, %v81
  %v106 = vpack.c.b16 %v84, %v82
  %v107 = vpack.c.b16 %v87, %v85
  %v108 = vpack.c.b16 %v88, %v86
  %v109 = vpack.c.b16 %v91, %v89
  %v110 = vpack.c.b16 %v92, %v90
  %v111 = vpack.c.b16 %v95, %v93
  %v112 = vpack.c.b16 %v96, %v94
  %129 = vmatpush.bf16.msra.mxu0 %v111
  %130 = vmatpush.bf16.msra.mxu0 %v109
  %131 = vmatpush.bf16.msra.mxu0 %v107
  %132 = vmatpush.bf16.msra.mxu0 %v105
  %133 = vmatpush.bf16.msra.mxu0 %v103
  %134 = vmatpush.bf16.msra.mxu0 %v101
  %135 = vmatpush.bf16.msra.mxu0 %v99
  %136 = vmatpush.bf16.msra.mxu0 %v97
  %137 = vmatmul.bf16.gmra.mxu0 %v26
  %v138 = vpop.f32.mrf.mxu0
  %v139 = vadd.f32 %v45, %v138
  %v140 = vpop.f32.mrf.mxu0
  %141 = vdwg.mxu0
  %142 = vmatpush.bf16.msra.mxu0 %v112
  %143 = vmatpush.bf16.msra.mxu0 %v110
  %144 = vmatpush.bf16.msra.mxu0 %v108
  %145 = vmatpush.bf16.msra.mxu0 %v106
  %146 = vmatpush.bf16.msra.mxu0 %v104
  %147 = vmatpush.bf16.msra.mxu0 %v102
  %148 = vmatpush.bf16.msra.mxu0 %v100
  %149 = vmatpush.bf16.msra.mxu0 %v98
  %150 = vmatmul.bf16.gmra.mxu0 %v26
  %v151 = vpop.f32.mrf.mxu0
  %v152 = vadd.f32 %v46, %v151
  %v153 = vpop.f32.mrf.mxu0
  %154 = vdwg.mxu0
  %v155 = vmax.f32 %v139, 0.0
  %v156 = vmax.f32 %v152, 0.0
  %v157 = vpack.c.bf16 %v155, %v155
  %v158 = vpack.c.bf16 %v156, %v156
  %v159 = vld [vmem:[%s3] sm:$0xf]
  %v160 = vld [vmem:[%s3 + $0x4] sm:$0xf]
  %v161 = vld [vmem:[%s3 + $0x8] sm:$0xf]
  %v162 = vld [vmem:[%s3 + $0xc] sm:$0xf]
  %v163 = vld [vmem:[%s3 + $0x10] sm:$0xf]
  %v164 = vld [vmem:[%s3 + $0x14] sm:$0xf]
  %v165 = vld [vmem:[%s3 + $0x18] sm:$0xf]
  %v166 = vld [vmem:[%s3 + $0x1c] sm:$0xf]
  %v167 = vld [vmem:[%s3 + $0x20] sm:$0xf]
  %v168 = vld [vmem:[%s3 + $0x24] sm:$0xf]
  %v169 = vld [vmem:[%s3 + $0x28] sm:$0xf]
  %v170 = vld [vmem:[%s3 + $0x2c] sm:$0xf]
  %v171 = vld [vmem:[%s3 + $0x30] sm:$0xf]
  %v172 = vld [vmem:[%s3 + $0x34] sm:$0xf]
  %v173 = vld [vmem:[%s3 + $0x38] sm:$0xf]
  %v174 = vld [vmem:[%s3 + $0x3c] sm:$0xf]
  %v175 = vld [vmem:[%s3 + $0x40] sm:$0xf]
  %v176 = vld [vmem:[%s3 + $0x44] sm:$0xf]
  %v177 = vld [vmem:[%s3 + $0x48] sm:$0xf]
  %v178 = vld [vmem:[%s3 + $0x4c] sm:$0xf]
  %v179 = vld [vmem:[%s3 + $0x50] sm:$0xf]
  %v180 = vld [vmem:[%s3 + $0x54] sm:$0xf]
  %v181 = vld [vmem:[%s3 + $0x58] sm:$0xf]
  %v182 = vld [vmem:[%s3 + $0x5c] sm:$0xf]
  %v183 = vld [vmem:[%s3 + $0x60] sm:$0xf]
  %v184 = vld [vmem:[%s3 + $0x64] sm:$0xf]
  %v185 = vld [vmem:[%s3 + $0x68] sm:$0xf]
  %v186 = vld [vmem:[%s3 + $0x6c] sm:$0xf]
  %v187 = vld [vmem:[%s3 + $0x70] sm:$0xf]
  %v188 = vld [vmem:[%s3 + $0x74] sm:$0xf]
  %v189 = vld [vmem:[%s3 + $0x78] sm:$0xf]
  %v190 = vld [vmem:[%s3 + $0x7c] sm:$0xf]
  %v191 = vld [vmem:[%s4] sm:$0x1]
  %v193 = vperm.slane %v191, 0
  %v227 = vunpack.c.l.b16 %v159
  %v228 = vunpack.c.l.b16 %v160
  %v229 = vunpack.c.l.b16 %v161
  %v230 = vunpack.c.l.b16 %v162
  %v231 = vunpack.c.l.b16 %v163
  %v232 = vunpack.c.l.b16 %v164
  %v233 = vunpack.c.l.b16 %v165
  %v234 = vunpack.c.l.b16 %v166
  %v235 = vunpack.c.l.b16 %v167
  %v236 = vunpack.c.l.b16 %v168
  %v237 = vunpack.c.l.b16 %v169
  %v238 = vunpack.c.l.b16 %v170
  %v239 = vunpack.c.l.b16 %v171
  %v240 = vunpack.c.l.b16 %v172
  %v241 = vunpack.c.l.b16 %v173
  %v242 = vunpack.c.l.b16 %v174
  %v243 = vunpack.c.l.b16 %v175
  %v244 = vunpack.c.l.b16 %v176
  %v245 = vunpack.c.l.b16 %v177
  %v246 = vunpack.c.l.b16 %v178
  %v247 = vunpack.c.l.b16 %v179
  %v248 = vunpack.c.l.b16 %v180
  %v249 = vunpack.c.l.b16 %v181
  %v250 = vunpack.c.l.b16 %v182
  %v251 = vunpack.c.l.b16 %v183
  %v252 = vunpack.c.l.b16 %v184
  %v253 = vunpack.c.l.b16 %v185
  %v254 = vunpack.c.l.b16 %v186
  %v255 = vunpack.c.l.b16 %v187
  %v256 = vunpack.c.l.b16 %v188
  %v257 = vunpack.c.l.b16 %v189
  %v258 = vunpack.c.l.b16 %v190
  %v259 = vpack.c.b16 %v228, %v227
  %v260 = vpack.c.b16 %v230, %v229
  %v261 = vpack.c.b16 %v232, %v231
  %v262 = vpack.c.b16 %v234, %v233
  %v263 = vpack.c.b16 %v236, %v235
  %v264 = vpack.c.b16 %v238, %v237
  %v265 = vpack.c.b16 %v240, %v239
  %v266 = vpack.c.b16 %v242, %v241
  %v267 = vpack.c.b16 %v244, %v243
  %v268 = vpack.c.b16 %v246, %v245
  %v269 = vpack.c.b16 %v248, %v247
  %v270 = vpack.c.b16 %v250, %v249
  %v271 = vpack.c.b16 %v252, %v251
  %v272 = vpack.c.b16 %v254, %v253
  %v273 = vpack.c.b16 %v256, %v255
  %v274 = vpack.c.b16 %v258, %v257
  %291 = vmatpush.bf16.msra.mxu0 %v266
  %292 = vmatpush.bf16.msra.mxu0 %v265
  %293 = vmatpush.bf16.msra.mxu0 %v264
  %294 = vmatpush.bf16.msra.mxu0 %v263
  %295 = vmatpush.bf16.msra.mxu0 %v262
  %296 = vmatpush.bf16.msra.mxu0 %v261
  %297 = vmatpush.bf16.msra.mxu0 %v260
  %298 = vmatpush.bf16.msra.mxu0 %v259
  %299 = vmatmul.bf16.gmra.mxu0 %v157
  %v300 = vpop.f32.mrf.mxu0
  %v301 = vadd.f32 %v193, %v300
  %v302 = vpop.f32.mrf.mxu0
  %303 = vdwg.mxu0
  %304 = vmatpush.bf16.msra.mxu0 %v274
  %305 = vmatpush.bf16.msra.mxu0 %v273
  %306 = vmatpush.bf16.msra.mxu0 %v272
  %307 = vmatpush.bf16.msra.mxu0 %v271
  %308 = vmatpush.bf16.msra.mxu0 %v270
  %309 = vmatpush.bf16.msra.mxu0 %v269
  %310 = vmatpush.bf16.msra.mxu0 %v268
  %311 = vmatpush.bf16.msra.mxu0 %v267
  %312 = vmatmul.bf16.gmra.mxu0 %v158
  %v313 = vpop.f32.mrf.mxu0
  %v314 = vadd.f32 %v301, %v313
  %v315 = vpop.f32.mrf.mxu0
  %316 = vdwg.mxu0
  %v317 = vmax.f32 %v314, 0.0
  %v318 = vpack.c.bf16 %v317, %v317
  %v319 = vld [vmem:[%s5] sm:$0xf]
  %v320 = vld [vmem:[%s5 + $0x4] sm:$0xf]
  %v321 = vld [vmem:[%s5 + $0x8] sm:$0xf]
  %v322 = vld [vmem:[%s5 + $0xc] sm:$0xf]
  %v323 = vld [vmem:[%s5 + $0x10] sm:$0xf]
  %v324 = vld [vmem:[%s5 + $0x14] sm:$0xf]
  %v325 = vld [vmem:[%s5 + $0x18] sm:$0xf]
  %v326 = vld [vmem:[%s5 + $0x1c] sm:$0xf]
  %v327 = vld [vmem:[%s5 + $0x20] sm:$0xf]
  %v328 = vld [vmem:[%s5 + $0x24] sm:$0xf]
  %v329 = vld [vmem:[%s5 + $0x28] sm:$0xf]
  %v330 = vld [vmem:[%s5 + $0x2c] sm:$0xf]
  %v331 = vld [vmem:[%s5 + $0x30] sm:$0xf]
  %v332 = vld [vmem:[%s5 + $0x34] sm:$0xf]
  %v333 = vld [vmem:[%s5 + $0x38] sm:$0xf]
  %v334 = vld [vmem:[%s5 + $0x3c] sm:$0xf]
  %v335 = vld [vmem:[%s6] sm:$0x1]
  %v337 = vperm.slane %v335, 0
  %v355 = vunpack.c.l.b16 %v319
  %v356 = vunpack.c.l.b16 %v320
  %v357 = vunpack.c.l.b16 %v321
  %v358 = vunpack.c.l.b16 %v322
  %v359 = vunpack.c.l.b16 %v323
  %v360 = vunpack.c.l.b16 %v324
  %v361 = vunpack.c.l.b16 %v325
  %v362 = vunpack.c.l.b16 %v326
  %v363 = vunpack.c.l.b16 %v327
  %v364 = vunpack.c.l.b16 %v328
  %v365 = vunpack.c.l.b16 %v329
  %v366 = vunpack.c.l.b16 %v330
  %v367 = vunpack.c.l.b16 %v331
  %v368 = vunpack.c.l.b16 %v332
  %v369 = vunpack.c.l.b16 %v333
  %v370 = vunpack.c.l.b16 %v334
  %v371 = vpack.c.b16 %v356, %v355
  %v372 = vpack.c.b16 %v358, %v357
  %v373 = vpack.c.b16 %v360, %v359
  %v374 = vpack.c.b16 %v362, %v361
  %v375 = vpack.c.b16 %v364, %v363
  %v376 = vpack.c.b16 %v366, %v365
  %v377 = vpack.c.b16 %v368, %v367
  %v378 = vpack.c.b16 %v370, %v369
  %387 = vmatpush.bf16.msra.mxu0 %v378
  %388 = vmatpush.bf16.msra.mxu0 %v377
  %389 = vmatpush.bf16.msra.mxu0 %v376
  %390 = vmatpush.bf16.msra.mxu0 %v375
  %391 = vmatpush.bf16.msra.mxu0 %v374
  %392 = vmatpush.bf16.msra.mxu0 %v373
  %393 = vmatpush.bf16.msra.mxu0 %v372
  %394 = vmatpush.bf16.msra.mxu0 %v371
  %395 = vmatmul.bf16.gmra.mxu0 %v318
  %v396 = vpop.f32.mrf.mxu0
  %v397 = vadd.f32 %v337, %v396
  %v398 = vpop.f32.mrf.mxu0
  %399 = vdwg.mxu0
  %400 = vst [vmem:[%s7] sm:$0xff] %v397
  // Predicated region
  $region30: #{mlp_forward.1} parent=0 // pred_check
    _
  $region31: #{mlp_forward.1} parent=0 // pred_check_branch
    %402 = sbr.rel (0) target = $region33
  $region32: #{mlp_forward.1} parent=0 // pred_region
    _
  $region33: #{mlp_forward.1} parent=0 // pred_fallthru
    _
  // Predicated region
  $region34: #{mlp_forward.1} parent=0 // pred_check
    _
  $region35: #{mlp_forward.1} parent=0 // pred_check_branch
    %404 = sbr.rel (0) target = $region37
  $region36: #{mlp_forward.1} parent=0 // pred_region
    _
  $region37: #{mlp_forward.1} parent=0 // pred_fallthru
    _

</llo_original>
